<compile_context>
chip_gen: v7x
topology: tpu7x:2x2x1
jax: 0.10.0
libtpu: 0.0.40
codegen_flags: <defaults>
</compile_context>

<pallas_src>
import functools

import jax
import jax.numpy as jnp
from jax import lax
from jax.experimental import pallas as pl
from jax.experimental.pallas import tpu as pltpu


# ----------------------------------------------------------------------------
# Packed-parameter layout ([80, 128] f32, zeros everywhere else):
#   rows  0:50, cols 0:8   -> W1 [50, 8]      rows  0:50, col  8 -> b1
#   rows 56:66, cols 0:50  -> W2 [10, 50]     rows 56:66, col 56 -> b2
#   row  72,    cols 0:10  -> W3 [1, 10]      row  72,    col 16 -> b3
# All row starts / extents are multiples of 8 -> sublane-aligned ref slices.
# Padded weight rows give sigmoid(0)=0.5 activations, but the corresponding
# (zero) weight columns of the next layer cancel them exactly (also in bf16,
# since the padding is exactly 0).
# ----------------------------------------------------------------------------
_P_ROWS, _P_COLS = 80, 128
_SUB = 256   # lanes per inner sub-block: h1 is [56, 256] f32 = 14 vregs


def _sigmoid(h):
    # sigmoid(h) = 0.5 * tanh(0.5*h) + 0.5 : one EUP op per element; the
    # scale/offset are cheap VPU ops (4 idle VALU slots).
    return 0.5 * jnp.tanh(0.5 * h) + 0.5


def mlp_kernel(params_ref, x_ref, o_ref):
    # Weights -> bf16 once per grid step (MXU-native single pass).
    # Biases stay f32 and are added to the f32 matmul accumulator.
    w1 = params_ref[0:56, 0:8].astype(jnp.bfloat16)      # [56, 8]
    b1 = params_ref[0:56, 8:9]                            # [56, 1] f32
    w2 = params_ref[56:72, 0:56].astype(jnp.bfloat16)     # [16, 56]
    b2 = params_ref[56:72, 56:57]                          # [16, 1] f32
    w3 = params_ref[72:73, 0:16].astype(jnp.bfloat16)     # [1, 16]  (single row:
    b3 = params_ref[72:73, 16:17]                           # no dead MXU rows)

    n_sub = x_ref.shape[1] // _SUB   # static (block shape is static)

    def body(j, carry):
        off = pl.multiple_of(j * _SUB, _SUB)
        xs = x_ref[:, pl.ds(off, _SUB)].astype(jnp.bfloat16)             # [8, SUB]
        h1 = _sigmoid(jnp.dot(w1, xs,
                              preferred_element_type=jnp.float32) + b1)  # [56, SUB]
        h2 = _sigmoid(jnp.dot(w2, h1.astype(jnp.bfloat16),
                              preferred_element_type=jnp.float32) + b2)  # [16, SUB]
        y = _sigmoid(jnp.dot(w3, h2.astype(jnp.bfloat16),
                             preferred_element_type=jnp.float32) + b3)   # [1, SUB]
        o_ref[:, pl.ds(off, _SUB)] = y.astype(o_ref.dtype)               # lane-dense
        return carry

    lax.fori_loop(0, n_sub, body, None, unroll=True)


def _round_up(n, m):
    return ((n + m - 1) // m) * m


def pack_params(w1, b1, w2, b2, w3, b3):
    """Concatenate all layer parameters (PyTorch [out,in] layout) into one
    zero-padded [80, 128] f32 buffer -> a single, VMEM-resident input DMA."""
    p = jnp.zeros((_P_ROWS, _P_COLS), jnp.float32)
    p = p.at[0:50, 0:8].set(w1.astype(jnp.float32))
    p = p.at[0:50, 8].set(b1.astype(jnp.float32))
    p = p.at[56:66, 0:50].set(w2.astype(jnp.float32))
    p = p.at[56:66, 56].set(b2.astype(jnp.float32))
    p = p.at[72, 0:10].set(w3[0].astype(jnp.float32))
    p = p.at[72, 16].set(b3[0].astype(jnp.float32))
    return p


@functools.partial(jax.jit, static_argnames=("batch_tile",))
def mlp_forward(x, w1, b1, w2, b2, w3, b3, *, batch_tile=4096):
    """x: [B, 8] f32; weights in PyTorch layout (w:[out,in], b:[out]).
    Returns [B, 1] f32, matching Model.forward."""
    B = x.shape[0]
    params = pack_params(w1, b1, w2, b2, w3, b3)

    # Batch tile: a multiple of _SUB lanes.  Split into >=2 tiles when the
    # batch allows it so the "parallel" grid axis uses both v7x TensorCores
    # (no-op on single-TC v5e/v6e).  VMEM footprint at TB=4096 is < 1 MiB.
    tb = max(_SUB, min(batch_tile, _round_up(pl.cdiv(B, 2), _SUB)))
    b_pad = _round_up(B, tb)
    num_tiles = b_pad // tb

    # Batch on the lane axis; padded batch columns are zero and sliced off
    # below.  The transpose/pad/slice run under the same jit as the kernel.
    xt = jnp.zeros((8, b_pad), jnp.float32).at[:, :B].set(x.T)

    yt = pl.pallas_call(
        mlp_kernel,
        out_shape=jax.ShapeDtypeStruct((1, b_pad), jnp.float32),
        grid=(num_tiles,),
        in_specs=[
            # Parameters: constant index_map -> DMA'd once, VMEM-resident.
            pl.BlockSpec((_P_ROWS, _P_COLS), lambda i: (0, 0)),
            # Activations: one batch tile per grid step.
            pl.BlockSpec((8, tb), lambda i: (0, i)),
        ],
        out_specs=pl.BlockSpec((1, tb), lambda i: (0, i)),
        compiler_params=pltpu.CompilerParams(
            dimension_semantics=("parallel",),
        ),
    )(params, xt)

    return yt[0, :B].reshape(B, 1)


# ----------------------------------------------------------------------------
# Reference / test harness
# ----------------------------------------------------------------------------
def init_linear(key, fan_in, fan_out):
    # PyTorch nn.Linear default init: U(-1/sqrt(fan_in), 1/sqrt(fan_in)),
    # weight layout [out, in], bias [out].
    kw, kb = jax.random.split(key)
    bound = 1.0 / float(fan_in) ** 0.5
    w = jax.random.uniform(kw, (fan_out, fan_in), jnp.float32, -bound, bound)
    b = jax.random.uniform(kb, (fan_out,), jnp.float32, -bound, bound)
    return w, b


def reference_forward(x, w1, b1, w2, b2, w3, b3):
    h1 = jax.nn.sigmoid(x @ w1.T + b1)
    h2 = jax.nn.sigmoid(h1 @ w2.T + b2)
    return jax.nn.sigmoid(h2 @ w3.T + b3)


if __name__ == "__main__":
    key = jax.random.PRNGKey(0)
    kx, k1, k2, k3 = jax.random.split(key, 4)

    B = 300  # exercises batch padding (300 -> 512) and a 2-tile parallel grid
    x = jax.random.normal(kx, (B, 8), jnp.float32)

    w1, b1 = init_linear(k1, 8, 50)
    w2, b2 = init_linear(k2, 50, 10)
    w3, b3 = init_linear(k3, 10, 1)

    y = mlp_forward(x, w1, b1, w2, b2, w3, b3)
    y = jax.block_until_ready(y)

    y_ref = reference_forward(x, w1, b1, w2, b2, w3, b3)
    assert y.shape == (B, 1)
    # bf16 matmul operands (f32 accumulation, f32 biases/activations) give
    # ~1e-3 worst-case absolute error on a sigmoid output in (0, 1); 3e-3 is a
    # comfortable bound while keeping the f32 reference as ground truth.
    assert jnp.allclose(y, y_ref, atol=3e-3, rtol=3e-3), float(
        jnp.max(jnp.abs(y - y_ref)))

    print("KERNEL_OK")
</pallas_src>

<mosaic_0001>
module attributes {stable_mosaic.version = 11 : i64} {
  func.func @mlp_kernel(%arg0: i32, %arg1: memref<80x128xf32, #tpu.memory_space<vmem>>, %arg2: memref<8x256xf32, #tpu.memory_space<vmem>>, %arg3: memref<1x256xf32, #tpu.memory_space<vmem>>) attributes {dimension_semantics = [#tpu.dimension_semantics<parallel>], iteration_bounds = array<i64: 2>, scalar_prefetch = 0 : i64, scratch_operands = 0 : i64, tpu.core_type = #tpu.core_type<tc>, window_params = [{pipeline_mode = #tpu.pipeline_mode<synchronous>, transform_indices = @transform_0, window_bounds = array<i64: 80, 128>}, {transform_indices = @transform_1, window_bounds = array<i64: 8, 256>}, {transform_indices = @transform_2, window_bounds = array<i64: 1, 256>}]} {
    %c0 = arith.constant 0 : index
    %c0_0 = arith.constant 0 : index
    %0 = vector.load %arg1[%c0, %c0_0] : memref<80x128xf32, #tpu.memory_space<vmem>>, vector<56x8xf32>
    %1 = arith.truncf %0 : vector<56x8xf32> to vector<56x8xbf16>
    %c0_1 = arith.constant 0 : index
    %c8 = arith.constant 8 : index
    %2 = vector.load %arg1[%c0_1, %c8] : memref<80x128xf32, #tpu.memory_space<vmem>>, vector<56x1xf32>
    %c56 = arith.constant 56 : index
    %c0_2 = arith.constant 0 : index
    %3 = vector.load %arg1[%c56, %c0_2] : memref<80x128xf32, #tpu.memory_space<vmem>>, vector<16x56xf32>
    %4 = arith.truncf %3 : vector<16x56xf32> to vector<16x56xbf16>
    %c56_3 = arith.constant 56 : index
    %c56_4 = arith.constant 56 : index
    %5 = vector.load %arg1[%c56_3, %c56_4] : memref<80x128xf32, #tpu.memory_space<vmem>>, vector<16x1xf32>
    %c72 = arith.constant 72 : index
    %c0_5 = arith.constant 0 : index
    %6 = vector.load %arg1[%c72, %c0_5] : memref<80x128xf32, #tpu.memory_space<vmem>>, vector<1x16xf32>
    %7 = arith.truncf %6 : vector<1x16xf32> to vector<1x16xbf16>
    %c72_6 = arith.constant 72 : index
    %c16 = arith.constant 16 : index
    %8 = vector.load %arg1[%c72_6, %c16] : memref<80x128xf32, #tpu.memory_space<vmem>>, vector<1x1xf32>
    %c0_i32 = arith.constant 0 : i32
    %c256_i32 = arith.constant 256 : i32
    %9 = arith.muli %c0_i32, %c256_i32 : i32
    %10 = tpu.assume_multiple %9, 256 : i32
    %c0_7 = arith.constant 0 : index
    %11 = arith.index_cast %10 : i32 to index
    %12 = vector.load %arg2[%c0_7, %11] : memref<8x256xf32, #tpu.memory_space<vmem>>, vector<8x256xf32>
    %13 = arith.truncf %12 : vector<8x256xf32> to vector<8x256xbf16>
    %cst = arith.constant dense<0.000000e+00> : vector<56x256xf32>
    %14 = tpu.matmul %1, %13, %cst {dimension_numbers = #tpu.dot_dimension_numbers<[1], [0], [0], [1], [0, 0, 1, 1], [], []>} : vector<56x8xbf16>, vector<8x256xbf16>, vector<56x256xf32> -> vector<56x256xf32>
    %15 = vector.broadcast %2 : vector<56x1xf32> to vector<56x256xf32>
    %16 = arith.addf %14, %15 : vector<56x256xf32>
    %cst_8 = arith.constant 5.000000e-01 : f32
    %17 = vector.broadcast %cst_8 : f32 to vector<56x256xf32>
    %18 = arith.mulf %17, %16 : vector<56x256xf32>
    %19 = math.tanh %18 : vector<56x256xf32>
    %cst_9 = arith.constant 5.000000e-01 : f32
    %20 = vector.broadcast %cst_9 : f32 to vector<56x256xf32>
    %21 = arith.mulf %20, %19 : vector<56x256xf32>
    %cst_10 = arith.constant 5.000000e-01 : f32
    %22 = vector.broadcast %cst_10 : f32 to vector<56x256xf32>
    %23 = arith.addf %21, %22 : vector<56x256xf32>
    %24 = arith.truncf %23 : vector<56x256xf32> to vector<56x256xbf16>
    %cst_11 = arith.constant dense<0.000000e+00> : vector<16x256xf32>
    %25 = tpu.matmul %4, %24, %cst_11 {dimension_numbers = #tpu.dot_dimension_numbers<[1], [0], [0], [1], [0, 0, 1, 1], [], []>} : vector<16x56xbf16>, vector<56x256xbf16>, vector<16x256xf32> -> vector<16x256xf32>
    %26 = vector.broadcast %5 : vector<16x1xf32> to vector<16x256xf32>
    %27 = arith.addf %25, %26 : vector<16x256xf32>
    %cst_12 = arith.constant 5.000000e-01 : f32
    %28 = vector.broadcast %cst_12 : f32 to vector<16x256xf32>
    %29 = arith.mulf %28, %27 : vector<16x256xf32>
    %30 = math.tanh %29 : vector<16x256xf32>
    %cst_13 = arith.constant 5.000000e-01 : f32
    %31 = vector.broadcast %cst_13 : f32 to vector<16x256xf32>
    %32 = arith.mulf %31, %30 : vector<16x256xf32>
    %cst_14 = arith.constant 5.000000e-01 : f32
    %33 = vector.broadcast %cst_14 : f32 to vector<16x256xf32>
    %34 = arith.addf %32, %33 : vector<16x256xf32>
    %35 = arith.truncf %34 : vector<16x256xf32> to vector<16x256xbf16>
    %cst_15 = arith.constant dense<0.000000e+00> : vector<1x256xf32>
    %36 = tpu.matmul %7, %35, %cst_15 {dimension_numbers = #tpu.dot_dimension_numbers<[1], [0], [0], [1], [0, 0, 1, 1], [], []>} : vector<1x16xbf16>, vector<16x256xbf16>, vector<1x256xf32> -> vector<1x256xf32>
    %37 = vector.broadcast %8 : vector<1x1xf32> to vector<1x256xf32>
    %38 = arith.addf %36, %37 : vector<1x256xf32>
    %cst_16 = arith.constant 5.000000e-01 : f32
    %39 = vector.broadcast %cst_16 : f32 to vector<1x256xf32>
    %40 = arith.mulf %39, %38 : vector<1x256xf32>
    %41 = math.tanh %40 : vector<1x256xf32>
    %cst_17 = arith.constant 5.000000e-01 : f32
    %42 = vector.broadcast %cst_17 : f32 to vector<1x256xf32>
    %43 = arith.mulf %42, %41 : vector<1x256xf32>
    %cst_18 = arith.constant 5.000000e-01 : f32
    %44 = vector.broadcast %cst_18 : f32 to vector<1x256xf32>
    %45 = arith.addf %43, %44 : vector<1x256xf32>
    %c0_19 = arith.constant 0 : index
    %46 = arith.index_cast %10 : i32 to index
    %47 = vector.load %arg3[%c0_19, %46] : memref<1x256xf32, #tpu.memory_space<vmem>>, vector<1x256xf32>
    tpu.vector_store %arg3[%c0_19, %46], %45 {strides = array<i32>} : memref<1x256xf32, #tpu.memory_space<vmem>>, vector<1x256xf32>,
    %c1_i32 = arith.constant 1 : i32
    return
  }
  func.func @transform_0(%arg0: i32) -> (i32, i32) {
    %c0_i32 = arith.constant 0 : i32
    %c0_i32_0 = arith.constant 0 : i32
    %c0_i32_1 = arith.constant 0 : i32
    return %c0_i32, %c0_i32_0 : i32, i32
  }
  func.func @transform_1(%arg0: i32) -> (i32, i32) {
    %c0_i32 = arith.constant 0 : i32
    %c0_i32_0 = arith.constant 0 : i32
    return %c0_i32, %arg0 : i32, i32
  }
  func.func @transform_2(%arg0: i32) -> (i32, i32) {
    %c0_i32 = arith.constant 0 : i32
    %c0_i32_0 = arith.constant 0 : i32
    return %c0_i32, %arg0 : i32, i32
  }
}

</mosaic_0001>

<llo_original>
// kernel: mlp_forward.1
$region0: #{mlp_forward.1}
  #allocation0 [shape = 'u32[]', space=smem, size = 0x4, offset = 0x4, fixed_abs, tag = 'smem constant byte address 0x4 - core index']
  #allocation1 [shape = 'u32[144,128]{1,0:T(1,128)}', space=vmem, size = 0x12000, scoped, tag = 'internal scratch']
  %s0 = inlined_call_operand.vmem [shape: f32[80,128], index: 0, kind: input, shape index: {}]
  %s1 = inlined_call_operand.vmem [shape: f32[8,512], index: 1, kind: input, shape index: {}]
  %s2 = inlined_call_operand.vmem [shape: f32[1,512], index: 2, kind: output, shape index: {}]
  %s3 = sld [smem:[#allocation0]]
  $region41: #{mlp_forward.1} parent=0
    _
  %s5 = ssub.s32 1, %s3
  %s6 = scalar_select 0, %s5, %s3
  loop: start=0, step=1, limit=4
  $region2: #{mlp_forward.1} parent=0 // loop_pre_header
    _
  $region3: #{mlp_forward.1} parent=0 // loop_header
    %s8 = sphi 0, %s12
    %p9 = scmp.ge.s32.totalorder %s8, 4
    %s16 = sphi 0, %s16
    %s18 = sphi 0, %s16
    %s19 = sphi 0, %s18
    %s33 = sphi 0, %s19
    %s39 = sphi 0, %s41
    %s42 = sphi 0, %s39
    %s43 = sphi 0, %s42
    %s59 = sphi 0, %s43
    %s65 = sphi 0, %s67
    %s68 = sphi 0, %s65
    %s69 = sphi 0, %s68
    %s85 = sphi 0, %s69
  $region4: #{mlp_forward.1} parent=0 // loop_header_branch
    %11 = sbr.rel (%p9) target = $region8
  $region5: #{mlp_forward.1} parent=0 // loop_body
    %s13 = ssub.s32 %s8, 1
    %s14 = ssub.s32 %s8, 2
    %s15 = sadd.s32 %s8, 1
    %s17 = sadd.s32 %s16, 1
    %p20 = scmp.eq.s32.totalorder %s8, 1
    %p21 = scmp.ne.s32.totalorder %s16, %s18
    %p22 = scmp.eq.s32.totalorder %s8, 0
    %p23 = por %p21, %p22
    %p24 = scmp.ne.s32.totalorder %s16, %s18
    %p25 = scmp.eq.s32.totalorder %s13, 1
    %p26 = por %p24, %p25
    %p27 = scmp.ne.s32.totalorder %s18, %s19
    %p28 = scmp.eq.s32.totalorder %s13, 0
    %p29 = por %p27, %p28
    %p30 = scmp.ne.s32.totalorder %s18, %s19
    %p31 = scmp.eq.s32.totalorder %s14, 1
    %p32 = por %p30, %p31
    %p34 = scmp.ne.s32.totalorder %s19, %s33
    %p35 = scmp.eq.s32.totalorder %s14, 0
    %p36 = por %p34, %p35
    %s37 = ssub.s32 %s8, %s15
    %p38 = scmp.eq.s32.totalorder %s37, 0
    %s40 = sadd.s32 %s39, 1
    %s41 = scalar_select %p38, %s39, %s40
    %p44 = pneg %p38
    %p45 = scmp.eq.s32.totalorder %s8, 1
    %p46 = por %p44, %p45
    %p47 = scmp.ne.s32.totalorder %s39, %s42
    %p48 = scmp.eq.s32.totalorder %s8, 0
    %p49 = por %p47, %p48
    %p50 = scmp.ne.s32.totalorder %s39, %s42
    %p51 = scmp.eq.s32.totalorder %s13, 1
    %p52 = por %p50, %p51
    %p53 = scmp.ne.s32.totalorder %s42, %s43
    %p54 = scmp.eq.s32.totalorder %s13, 0
    %p55 = por %p53, %p54
    %p56 = scmp.ne.s32.totalorder %s42, %s43
    %p57 = scmp.eq.s32.totalorder %s14, 1
    %p58 = por %p56, %p57
    %p60 = scmp.ne.s32.totalorder %s43, %s59
    %p61 = scmp.eq.s32.totalorder %s14, 0
    %p62 = por %p60, %p61
    %s63 = ssub.s32 %s8, %s15
    %p64 = scmp.eq.s32.totalorder %s63, 0
    %s66 = sadd.s32 %s65, 1
    %s67 = scalar_select %p64, %s65, %s66
    %p70 = pneg %p64
    %p71 = scmp.eq.s32.totalorder %s8, 1
    %p72 = por %p70, %p71
    %p73 = scmp.ne.s32.totalorder %s65, %s68
    %p74 = scmp.eq.s32.totalorder %s8, 0
    %p75 = por %p73, %p74
    %p76 = scmp.ne.s32.totalorder %s65, %s68
    %p77 = scmp.eq.s32.totalorder %s13, 1
    %p78 = por %p76, %p77
    %p79 = scmp.ne.s32.totalorder %s68, %s69
    %p80 = scmp.eq.s32.totalorder %s13, 0
    %p81 = por %p79, %p80
    %p82 = scmp.ne.s32.totalorder %s68, %s69
    %p83 = scmp.eq.s32.totalorder %s14, 1
    %p84 = por %p82, %p83
    %p86 = scmp.ne.s32.totalorder %s69, %s85
    %p87 = scmp.eq.s32.totalorder %s14, 0
    %p88 = por %p86, %p87
    %p89 = scmp.le.s32.totalorder 1, %s8
    %p90 = scmp.lt.s32.totalorder %s8, 3
    %p91 = pnand %p89, %p90
    %p92 = pneg %p91
    // Predicated region
    $region9: #{mlp_forward.1} parent=5 // pred_check
      _
    $region10: #{mlp_forward.1} parent=5 // pred_check_branch
      %94 = sbr.rel (%p91) target = $region12
    $region11: #{mlp_forward.1} parent=5 // pred_region
      %s95 = ssub.s32 %s8, 1
      // Predicated region
      $region13: #{mlp_forward.1} parent=11 // pred_check
        %p96 = pneg %p29
      $region14: #{mlp_forward.1} parent=11 // pred_check_branch
        %98 = sbr.rel (%p96) target = $region16
      $region15: #{mlp_forward.1} parent=11 // pred_region
        _
      $region16: #{mlp_forward.1} parent=11 // pred_fallthru
        _
    $region12: #{mlp_forward.1} parent=5 // pred_fallthru
      _
    %p99 = scmp.lt.s32.totalorder %s8, 2
    // Predicated region
    $region17: #{mlp_forward.1} parent=5 // pred_check
      %p100 = pneg %p99
    $region18: #{mlp_forward.1} parent=5 // pred_check_branch
      %102 = sbr.rel (%p100) target = $region20
    $region19: #{mlp_forward.1} parent=5 // pred_region
      // Predicated region
      $region21: #{mlp_forward.1} parent=19 // pred_check
        %p103 = pneg %p49
      $region22: #{mlp_forward.1} parent=19 // pred_check_branch
        %105 = sbr.rel (%p103) target = $region24
      $region23: #{mlp_forward.1} parent=19 // pred_region
        %s106 = smul.u32 2, %s8
        %p107 = scmp.lt.s32.totalorder %s106, 3
        %s108 = scalar_select %p107, %s106, 3
        %s109 = smul.addr %s108, 8
        %s110 = scalar_lea.vmem %s1, %s109
        %s111 = smul.u32 2, %s8
      $region24: #{mlp_forward.1} parent=19 // pred_fallthru
        _
    $region20: #{mlp_forward.1} parent=5 // pred_fallthru
      _
    %p112 = scmp.le.s32.totalorder 1, %s8
    %p113 = scmp.lt.s32.totalorder %s8, 3
    %p114 = pnand %p112, %p113
    %p115 = pneg %p114
    // Predicated region
    $region25: #{mlp_forward.1} parent=5 // pred_check
      _
    $region26: #{mlp_forward.1} parent=5 // pred_check_branch
      %117 = sbr.rel (%p114) target = $region28
    $region27: #{mlp_forward.1} parent=5 // pred_region
      %s118 = ssub.s32 %s8, 1
      %p119 = pneg %p29
      %p120 = pneg %p26
      %s121 = smul.u32 2, %s13
      %p122 = scmp.lt.s32.totalorder %s121, 3
      %s123 = scalar_select %p122, %s121, 3
      %s124 = smul.addr %s123, 8
      %s125 = scalar_lea.vmem %s1, %s124
      %p126 = pneg %p55
      %p127 = pneg %p52
      %p128 = pneg %p81
      %p129 = pneg %p78
      %s130 = smul.u32 2, %s13
      %p131 = scmp.lt.s32.totalorder %s130, 3
      %s132 = scalar_select %p131, %s130, 3
      %s133 = scalar_lea.vmem %s2, %s132
      %s134 = smul.u32 2, %s13
      %p135 = scmp.lt.s32.totalorder %s134, 3
      %s136 = scalar_select %p135, %s134, 3
      %s137 = smul.addr %s136, 8
      %s138 = scalar_lea.vmem %s1, %s137
      %s139 = smul.u32 2, %s13
      %s140 = smul.u32 2, %s13
      %p141 = scmp.lt.s32.totalorder %s140, 3
      %s142 = scalar_select %p141, %s140, 3
      %s143 = scalar_lea.vmem %s2, %s142
      %s144 = smul.u32 2, %s13
      %v146 = vld [vmem:[%s0] sm:$0xff]
      %v147 = vld [vmem:[%s0 + $0x8] sm:$0xff]
      %v148 = vld [vmem:[%s0 + $0x10] sm:$0xff]
      %v149 = vld [vmem:[%s0 + $0x18] sm:$0xff]
      %v150 = vld [vmem:[%s0 + $0x20] sm:$0xff]
      %v151 = vld [vmem:[%s0 + $0x28] sm:$0xff]
      %v152 = vld [vmem:[%s0 + $0x30] sm:$0xff]
      %v153 = vpack.c.bf16 %v147, %v146
      %v154 = vpack.c.bf16 %v149, %v148
      %v155 = vpack.c.bf16 %v151, %v150
      %v156 = vpack.c.bf16 %v152, %v152
      %v157 = vld [vmem:[%s0 + $0x38] sm:$0xff]
      %v158 = vld [vmem:[%s0 + $0x40] sm:$0xff]
      %v159 = vpack.c.bf16 %v158, %v157
      %v160 = vld [vmem:[%s0 + $0x48] sm:$0x1]
      %v161 = vpack.c.bf16 %v160, %v160
      %v162 = vld [vmem:[%s138] sm:$0xff]
      %v163 = vld [vmem:[%s138 + $0x8] sm:$0xff]
      %v164 = vpack.c.bf16 %v162, %v162
      %v165 = vpack.c.bf16 %v163, %v163
      %167 = vset.pattern.permute.xlu0 8
      %168 = vperm.xlu0 %167, %v146
      %v169 = vpop.permute.xlu0 %168
      %172 = vset.pattern.permute.xlu0 8
      %173 = vperm.xlu0 %172, %v147
      %v174 = vpop.permute.xlu0 %173
      %177 = vset.pattern.permute.xlu0 8
      %178 = vperm.xlu0 %177, %v148
      %v179 = vpop.permute.xlu0 %178
      %182 = vset.pattern.permute.xlu0 8
      %183 = vperm.xlu0 %182, %v149
      %v184 = vpop.permute.xlu0 %183
      %187 = vset.pattern.permute.xlu0 8
      %188 = vperm.xlu0 %187, %v150
      %v189 = vpop.permute.xlu0 %188
      %192 = vset.pattern.permute.xlu0 8
      %193 = vperm.xlu0 %192, %v151
      %v194 = vpop.permute.xlu0 %193
      %197 = vset.pattern.permute.xlu0 8
      %198 = vperm.xlu0 %197, %v152
      %v199 = vpop.permute.xlu0 %198
      %vm201 = vcmask 64512
      %v203 = vsel %vm201, %v153, 0
      %v206 = vsel %vm201, %v154, 0
      %v209 = vsel %vm201, %v155, 0
      %v212 = vsel %vm201, %v156, 0
      %vm214 = vcmask 1043456
      %v216 = vsel %vm214, %v164, 0
      %v219 = vsel %vm214, %v165, 0
      %221 = vmatprep.subr.bf16.mxu0 %v219
      %222 = vmatpush1.bf16.msra.mxu0 %v216
      %223 = vmatprep.subr.bf16.mxu0 0
      %224 = vmatpush1.bf16.msra.mxu0 0
      %225 = vmatprep.subr.bf16.mxu0 0
      %226 = vmatpush1.bf16.msra.mxu0 0
      %227 = vmatprep.subr.bf16.mxu0 0
      %228 = vmatpush1.bf16.msra.mxu0 0
      %229 = vmatprep.subr.bf16.mxu0 0
      %230 = vmatpush1.bf16.msra.mxu0 0
      %231 = vmatprep.subr.bf16.mxu0 0
      %232 = vmatpush1.bf16.msra.mxu0 0
      %233 = vmatprep.subr.bf16.mxu0 0
      %234 = vmatpush1.bf16.msra.mxu0 0
      %235 = vmatprep.subr.bf16.mxu0 0
      %236 = vmatpush1.bf16.msra.mxu0 0
      %237 = vmatprep.subr.bf16.mxu0 0
      %238 = vmatpush1.bf16.msra.mxu0 0
      %239 = vmatprep.subr.bf16.mxu0 0
      %240 = vmatpush1.bf16.msra.mxu0 0
      %241 = vmatprep.subr.bf16.mxu0 0
      %242 = vmatpush1.bf16.msra.mxu0 0
      %243 = vmatprep.subr.bf16.mxu0 0
      %244 = vmatpush1.bf16.msra.mxu0 0
      %245 = vmatprep.subr.bf16.mxu0 0
      %246 = vmatpush1.bf16.msra.mxu0 0
      %247 = vmatprep.subr.bf16.mxu0 0
      %248 = vmatpush1.bf16.msra.mxu0 0
      %249 = vmatprep.subr.bf16.mxu0 0
      %250 = vmatpush1.bf16.msra.mxu0 0
      %251 = vmatprep.subr.bf16.mxu0 0
      %252 = vmatpush1.bf16.msra.mxu0 0
      %253 = vmatprep.mubr.bf16.mxu0 0
      %254 = vmatmul.mubr.bf16.gmra.mrb[0].mxu0 %v203
      %v255 = vpop.f32.mrb[0].mxu0
      %v256 = vadd.f32 %v169, %v255
      %v257 = vpop.f32.mrb[0].mxu0
      %v258 = vadd.f32 %v169, %v257
      %v259 = vpop.f32.mrb[0].mxu0
      %v260 = vadd.f32 %v174, %v259
      %v261 = vpop.f32.mrb[0].mxu0
      %v262 = vadd.f32 %v174, %v261
      %263 = vmatprep.mubr.bf16.mxu0 0
      %264 = vmatmul.mubr.bf16.gmra.mrb[0].mxu0 %v206
      %v265 = vpop.f32.mrb[0].mxu0
      %v266 = vadd.f32 %v179, %v265
      %v267 = vpop.f32.mrb[0].mxu0
      %v268 = vadd.f32 %v179, %v267
      %v269 = vpop.f32.mrb[0].mxu0
      %v270 = vadd.f32 %v184, %v269
      %v271 = vpop.f32.mrb[0].mxu0
      %v272 = vadd.f32 %v184, %v271
      %273 = vmatprep.mubr.bf16.mxu0 0
      %274 = vmatmul.mubr.bf16.gmra.mrb[0].mxu0 %v209
      %v275 = vpop.f32.mrb[0].mxu0
      %v276 = vadd.f32 %v189, %v275
      %v277 = vpop.f32.mrb[0].mxu0
      %v278 = vadd.f32 %v189, %v277
      %v279 = vpop.f32.mrb[0].mxu0
      %v280 = vadd.f32 %v194, %v279
      %v281 = vpop.f32.mrb[0].mxu0
      %v282 = vadd.f32 %v194, %v281
      %283 = vmatprep.mubr.bf16.mxu0 0
      %284 = vmatmul.mubr.bf16.gmra.mrb[0].mxu0 %v212
      %v285 = vpop.f32.mrb[0].mxu0
      %v286 = vadd.f32 %v199, %v285
      %v287 = vpop.f32.mrb[0].mxu0
      %v288 = vadd.f32 %v199, %v287
      %v289 = vpop.f32.mrb[0].mxu0
      %v290 = vpop.f32.mrb[0].mxu0
      %291 = vdwg.mxu0
      %v292 = vmul.f32 %v256, 0.5
      %v293 = vmul.f32 %v258, 0.5
      %v294 = vmul.f32 %v260, 0.5
      %v295 = vmul.f32 %v262, 0.5
      %v296 = vmul.f32 %v266, 0.5
      %v297 = vmul.f32 %v268, 0.5
      %v298 = vmul.f32 %v270, 0.5
      %v299 = vmul.f32 %v272, 0.5
      %v300 = vmul.f32 %v276, 0.5
      %v301 = vmul.f32 %v278, 0.5
      %v302 = vmul.f32 %v280, 0.5
      %v303 = vmul.f32 %v282, 0.5
      %v304 = vmul.f32 %v286, 0.5
      %v305 = vmul.f32 %v288, 0.5
      %v306 = vtanh.pop %v292
      %v307 = vtanh.pop %v293
      %v308 = vtanh.pop %v294
      %v309 = vtanh.pop %v295
      %v310 = vtanh.pop %v296
      %v311 = vtanh.pop %v297
      %v312 = vtanh.pop %v298
      %v313 = vtanh.pop %v299
      %v314 = vtanh.pop %v300
      %v315 = vtanh.pop %v301
      %v316 = vtanh.pop %v302
      %v317 = vtanh.pop %v303
      %v318 = vtanh.pop %v304
      %v319 = vtanh.pop %v305
      %v320 = vmul.f32 %v306, 0.5
      %v321 = vmul.f32 %v307, 0.5
      %v322 = vmul.f32 %v308, 0.5
      %v323 = vmul.f32 %v309, 0.5
      %v324 = vmul.f32 %v310, 0.5
      %v325 = vmul.f32 %v311, 0.5
      %v326 = vmul.f32 %v312, 0.5
      %v327 = vmul.f32 %v313, 0.5
      %v328 = vmul.f32 %v314, 0.5
      %v329 = vmul.f32 %v315, 0.5
      %v330 = vmul.f32 %v316, 0.5
      %v331 = vmul.f32 %v317, 0.5
      %v332 = vmul.f32 %v318, 0.5
      %v333 = vmul.f32 %v319, 0.5
      %v334 = vadd.f32 %v320, 0.5
      %v335 = vadd.f32 %v321, 0.5
      %v336 = vadd.f32 %v322, 0.5
      %v337 = vadd.f32 %v323, 0.5
      %v338 = vadd.f32 %v324, 0.5
      %v339 = vadd.f32 %v325, 0.5
      %v340 = vadd.f32 %v326, 0.5
      %v341 = vadd.f32 %v327, 0.5
      %v342 = vadd.f32 %v328, 0.5
      %v343 = vadd.f32 %v329, 0.5
      %v344 = vadd.f32 %v330, 0.5
      %v345 = vadd.f32 %v331, 0.5
      %v346 = vadd.f32 %v332, 0.5
      %v347 = vadd.f32 %v333, 0.5
      %v348 = vpack.c.bf16 %v336, %v334
      %v349 = vpack.c.bf16 %v337, %v335
      %v350 = vpack.c.bf16 %v340, %v338
      %v351 = vpack.c.bf16 %v341, %v339
      %v352 = vpack.c.bf16 %v344, %v342
      %v353 = vpack.c.bf16 %v345, %v343
      %v354 = vpack.c.bf16 %v346, %v346
      %v355 = vpack.c.bf16 %v347, %v347
      %357 = vset.pattern.permute.xlu0 56
      %358 = vperm.xlu0 %357, %v157
      %v359 = vpop.permute.xlu0 %358
      %362 = vset.pattern.permute.xlu0 56
      %363 = vperm.xlu0 %362, %v158
      %v364 = vpop.permute.xlu0 %363
      %vm366 = vcmask 457728
      %v368 = vsel %vm366, %v159, 0
      %v371 = vsel %vm214, %v354, 0
      %v374 = vsel %vm214, %v355, 0
      %376 = vmatprep.subr.bf16.mxu0 %v349
      %377 = vmatpush1.bf16.msra.mxu0 %v348
      %378 = vmatprep.subr.bf16.mxu0 %v351
      %379 = vmatpush1.bf16.msra.mxu0 %v350
      %380 = vmatprep.subr.bf16.mxu0 %v353
      %381 = vmatpush1.bf16.msra.mxu0 %v352
      %382 = vmatprep.subr.bf16.mxu0 %v374
      %383 = vmatpush1.bf16.msra.mxu0 %v371
      %384 = vmatprep.subr.bf16.mxu0 0
      %385 = vmatpush1.bf16.msra.mxu0 0
      %386 = vmatprep.subr.bf16.mxu0 0
      %387 = vmatpush1.bf16.msra.mxu0 0
      %388 = vmatprep.subr.bf16.mxu0 0
      %389 = vmatpush1.bf16.msra.mxu0 0
      %390 = vmatprep.subr.bf16.mxu0 0
      %391 = vmatpush1.bf16.msra.mxu0 0
      %392 = vmatprep.subr.bf16.mxu0 0
      %393 = vmatpush1.bf16.msra.mxu0 0
      %394 = vmatprep.subr.bf16.mxu0 0
      %395 = vmatpush1.bf16.msra.mxu0 0
      %396 = vmatprep.subr.bf16.mxu0 0
      %397 = vmatpush1.bf16.msra.mxu0 0
      %398 = vmatprep.subr.bf16.mxu0 0
      %399 = vmatpush1.bf16.msra.mxu0 0
      %400 = vmatprep.subr.bf16.mxu0 0
      %401 = vmatpush1.bf16.msra.mxu0 0
      %402 = vmatprep.subr.bf16.mxu0 0
      %403 = vmatpush1.bf16.msra.mxu0 0
      %404 = vmatprep.subr.bf16.mxu0 0
      %405 = vmatpush1.bf16.msra.mxu0 0
      %406 = vmatprep.subr.bf16.mxu0 0
      %407 = vmatpush1.bf16.msra.mxu0 0
      %408 = vmatprep.mubr.bf16.mxu0 0
      %409 = vmatmul.mubr.bf16.gmra.mrb[0].mxu0 %v368
      %v410 = vpop.f32.mrb[0].mxu0
      %v411 = vadd.f32 %v359, %v410
      %v412 = vpop.f32.mrb[0].mxu0
      %v413 = vadd.f32 %v359, %v412
      %v414 = vpop.f32.mrb[0].mxu0
      %v415 = vadd.f32 %v364, %v414
      %v416 = vpop.f32.mrb[0].mxu0
      %v417 = vadd.f32 %v364, %v416
      %418 = vdwg.mxu0
      %v419 = vmul.f32 %v411, 0.5
      %v420 = vmul.f32 %v413, 0.5
      %v421 = vmul.f32 %v415, 0.5
      %v422 = vmul.f32 %v417, 0.5
      %v423 = vtanh.pop %v419
      %v424 = vtanh.pop %v420
      %v425 = vtanh.pop %v421
      %v426 = vtanh.pop %v422
      %v427 = vmul.f32 %v423, 0.5
      %v428 = vmul.f32 %v424, 0.5
      %v429 = vmul.f32 %v425, 0.5
      %v430 = vmul.f32 %v426, 0.5
      %v431 = vadd.f32 %v427, 0.5
      %v432 = vadd.f32 %v428, 0.5
      %v433 = vadd.f32 %v429, 0.5
      %v434 = vadd.f32 %v430, 0.5
      %v435 = vpack.c.bf16 %v433, %v431
      %v436 = vpack.c.bf16 %v434, %v432
      %438 = vset.pattern.permute.xlu0 16
      %439 = vperm.xlu0 %438, %v160
      %v440 = vpop.permute.xlu0 %439
      %vm442 = vcmask 130048
      %v444 = vsel %vm442, %v161, 0
      %446 = vmatprep.subr.bf16.mxu0 %v436
      %447 = vmatpush1.bf16.msra.mxu0 %v435
      %448 = vmatprep.subr.bf16.mxu0 0
      %449 = vmatpush1.bf16.msra.mxu0 0
      %450 = vmatprep.subr.bf16.mxu0 0
      %451 = vmatpush1.bf16.msra.mxu0 0
      %452 = vmatprep.subr.bf16.mxu0 0
      %453 = vmatpush1.bf16.msra.mxu0 0
      %454 = vmatprep.subr.bf16.mxu0 0
      %455 = vmatpush1.bf16.msra.mxu0 0
      %456 = vmatprep.subr.bf16.mxu0 0
      %457 = vmatpush1.bf16.msra.mxu0 0
      %458 = vmatprep.subr.bf16.mxu0 0
      %459 = vmatpush1.bf16.msra.mxu0 0
      %460 = vmatprep.subr.bf16.mxu0 0
      %461 = vmatpush1.bf16.msra.mxu0 0
      %462 = vmatprep.subr.bf16.mxu0 0
      %463 = vmatpush1.bf16.msra.mxu0 0
      %464 = vmatprep.subr.bf16.mxu0 0
      %465 = vmatpush1.bf16.msra.mxu0 0
      %466 = vmatprep.subr.bf16.mxu0 0
      %467 = vmatpush1.bf16.msra.mxu0 0
      %468 = vmatprep.subr.bf16.mxu0 0
      %469 = vmatpush1.bf16.msra.mxu0 0
      %470 = vmatprep.subr.bf16.mxu0 0
      %471 = vmatpush1.bf16.msra.mxu0 0
      %472 = vmatprep.subr.bf16.mxu0 0
      %473 = vmatpush1.bf16.msra.mxu0 0
      %474 = vmatprep.subr.bf16.mxu0 0
      %475 = vmatpush1.bf16.msra.mxu0 0
      %476 = vmatprep.subr.bf16.mxu0 0
      %477 = vmatpush1.bf16.msra.mxu0 0
      %478 = vmatprep.mubr.bf16.mxu0 0
      %479 = vmatmul.mubr.bf16.gmra.mrb[0].mxu0 %v444
      %v480 = vpop.f32.mrb[0].mxu0
      %v481 = vadd.f32 %v440, %v480
      %v482 = vpop.f32.mrb[0].mxu0
      %v483 = vadd.f32 %v440, %v482
      %v484 = vpop.f32.mrb[0].mxu0
      %v485 = vpop.f32.mrb[0].mxu0
      %486 = vdwg.mxu0
      %v487 = vmul.f32 %v481, 0.5
      %v488 = vmul.f32 %v483, 0.5
      %v489 = vtanh.pop %v487
      %v490 = vtanh.pop %v488
      %v491 = vmul.f32 %v489, 0.5
      %v492 = vmul.f32 %v490, 0.5
      %v493 = vadd.f32 %v491, 0.5
      %v494 = vadd.f32 %v492, 0.5
      %v497 = vcombine.low %v493, %v494
      %v499 = vunpack.c.l.s4 1966171168
      %v500 = vunpack.c.0.s8 %v499
      %v501 = vlaneseq
      %v502 = vshrl.u32 %v501, 7
      %v503 = vsub.s32 %v500, %v502
      %v504 = vrot.slane %v497, %v503
      %v506 = vunpack.c.l.s4 1966171168
      %v507 = vunpack.c.0.s8 %v506
      %v508 = vlaneseq
      %v509 = vshrl.u32 %v508, 7
      %v510 = vsub.s32 %v507, %v509
      %v511 = vrot.slane %v504, %v510
      %v513 = vlaneseq
      %vm514 = vcmp.ge.s32.totalorder %v513, 0
      %vm515 = vcmp.lt.s32.totalorder %v513, 256
      %vm516 = vmand %vm514, %vm515
      %517 = vst.msk [vmem:[%s143] sm:$0x3] %vm516, %v511
      %s518 = smul.u32 2, %s13
      %p519 = scmp.lt.s32.totalorder %s518, 3
      %s520 = scalar_select %p519, %s518, 3
      %s521 = scalar_lea.vmem %s2, %s520
      // Predicated region
      $region29: #{mlp_forward.1} parent=27 // pred_check
        %p522 = pneg %p78
      $region30: #{mlp_forward.1} parent=27 // pred_check_branch
        %524 = sbr.rel (%p522) target = $region32
      $region31: #{mlp_forward.1} parent=27 // pred_region
        %s525 = smul.u32 2, %s13
      $region32: #{mlp_forward.1} parent=27 // pred_fallthru
        _
    $region28: #{mlp_forward.1} parent=5 // pred_fallthru
      _
    %p526 = scmp.le.s32.totalorder 2, %s8
    // Predicated region
    $region33: #{mlp_forward.1} parent=5 // pred_check
      %p527 = pneg %p526
    $region34: #{mlp_forward.1} parent=5 // pred_check_branch
      %529 = sbr.rel (%p527) target = $region36
    $region35: #{mlp_forward.1} parent=5 // pred_region
      %s530 = ssub.s32 %s8, 2
      // Predicated region
      $region37: #{mlp_forward.1} parent=35 // pred_check
        %p531 = pneg %p84
      $region38: #{mlp_forward.1} parent=35 // pred_check_branch
        %533 = sbr.rel (%p531) target = $region40
      $region39: #{mlp_forward.1} parent=35 // pred_region
        %s534 = smul.u32 2, %s14
        %p535 = scmp.lt.s32.totalorder %s534, 3
        %s536 = scalar_select %p535, %s534, 3
        %s537 = scalar_lea.vmem %s2, %s536
      $region40: #{mlp_forward.1} parent=35 // pred_fallthru
        _
    $region36: #{mlp_forward.1} parent=5 // pred_fallthru
      _
  $region6: #{mlp_forward.1} parent=0 // loop_footer
    %s12 = sadd.s32 1, %s8
  $region7: #{mlp_forward.1} parent=0 // loop_footer_branch
    %7 = sbr.rel target = $region3
  $region8: #{mlp_forward.1} parent=0 // loop_exit
    _

</llo_original>
